<compile_context>
chip_gen: v7x
topology: tpu7x:2x2x1
jax: 0.10.0
libtpu: 0.0.40
codegen_flags: <defaults>
</compile_context>

<pallas_src>
import functools

import jax
import jax.numpy as jnp
from jax.experimental import pallas as pl
from jax.experimental.pallas import tpu as pltpu


def token_encoder_kernel(x_ref, m_ref, w1x_ref, w1m_ref, b1_ref, w2_ref, b2_ref,
                         out_ref):
    """Fused: relu(relu(x@W1x + m@W1m + b1) @ W2 + b2) for one token tile."""
    # Single cast per operand for the MXU (m / weights already bf16).
    x = x_ref[...].astype(jnp.bfloat16)
    m = m_ref[...]

    # Layer 1: two MXU matmuls into the same f32 accumulator (replaces concat).
    h = jnp.dot(x, w1x_ref[...], preferred_element_type=jnp.float32)
    h = h + jnp.dot(m, w1m_ref[...], preferred_element_type=jnp.float32)
    h = jnp.maximum(h + b1_ref[...], 0.0)          # f32 epilogue

    # Layer 2 (hidden already lane-dense 128-wide after padding).
    o = jnp.dot(h.astype(jnp.bfloat16), w2_ref[...],
                preferred_element_type=jnp.float32)
    o = jnp.maximum(o + b2_ref[...], 0.0)

    out_ref[...] = o.astype(out_ref.dtype)


def token_encoder_forward(x, m, w1, b1, w2, b2, *, max_tile_bt=1024):
    """
    Args:
      x:  (B, T, d_input) float32 (missing values zero-filled)
      m:  (B, T, d_input) mask in {0, 1}
      w1: (2*d_input, d_model)   b1: (d_model,)
      w2: (d_model, d_model)     b2: (d_model,)
    Returns:
      (B, T, d_model) float32
    """
    B, T, d_input = x.shape
    d_model = w1.shape[1]
    BT = B * T

    # Lane-dense padded model dim (multiple of 128). Zero padding is exact:
    # padded columns stay 0 through both ReLUs and are sliced off at the end.
    d_pad = ((d_model + 127) // 128) * 128

    def pad_cols(a, n):
        return jnp.pad(a, ((0, 0), (0, n - a.shape[-1])))

    # Split W1 so we never materialize concat([x, m]) in HBM.
    w1x_p = pad_cols(w1[:d_input], d_pad).astype(jnp.bfloat16)
    w1m_p = pad_cols(w1[d_input:], d_pad).astype(jnp.bfloat16)
    b1_p = pad_cols(b1.reshape(1, d_model), d_pad).astype(jnp.float32)
    w2_p = jnp.pad(w2, ((0, d_pad - d_model),
                        (0, d_pad - d_model))).astype(jnp.bfloat16)
    b2_p = pad_cols(b2.reshape(1, d_model), d_pad).astype(jnp.float32)

    x2 = x.reshape(BT, d_input).astype(jnp.float32)
    m2 = m.reshape(BT, d_input).astype(jnp.bfloat16)   # {0,1}: exact, half bytes

    # Tile the token axis; tiles are sized well inside v7x's 32 MiB scoped VMEM
    # (inputs ~2*160 KiB + output ~512 KiB per buffer at tile=1024).
    tile_bt = BT if BT <= max_tile_bt else max_tile_bt
    grid = (pl.cdiv(BT, tile_bt),)

    act_map = lambda i: (i, 0)       # streamed per-tile
    res_map = lambda i: (0, 0)       # resident across the whole grid

    out = pl.pallas_call(
        token_encoder_kernel,
        out_shape=jax.ShapeDtypeStruct((BT, d_pad), jnp.float32),
        grid_spec=pltpu.PrefetchScalarGridSpec(
            num_scalar_prefetch=0,
            grid=grid,
            in_specs=[
                pl.BlockSpec((tile_bt, d_input), act_map),   # x tile
                pl.BlockSpec((tile_bt, d_input), act_map),   # m tile
                pl.BlockSpec((d_input, d_pad), res_map),     # W1x
                pl.BlockSpec((d_input, d_pad), res_map),     # W1m
                pl.BlockSpec((1, d_pad), res_map),           # b1
                pl.BlockSpec((d_pad, d_pad), res_map),       # W2
                pl.BlockSpec((1, d_pad), res_map),           # b2
            ],
            out_specs=pl.BlockSpec((tile_bt, d_pad), act_map),
        ),
        compiler_params=pltpu.CompilerParams(
            dimension_semantics=("parallel",),
            vmem_limit_bytes=32 * 1024 * 1024,
        ),
    )(x2, m2, w1x_p, w1m_p, b1_p, w2_p, b2_p)

    return out[:, :d_model].reshape(B, T, d_model)


def init_params(key, d_input, d_model):
    """Deterministic init mirroring nn.Linear; weights stored (in, out)."""
    k1, k2, k3, k4 = jax.random.split(key, 4)
    lim1 = 1.0 / jnp.sqrt(2 * d_input)
    lim2 = 1.0 / jnp.sqrt(d_model)
    w1 = jax.random.uniform(k1, (2 * d_input, d_model), jnp.float32, -lim1, lim1)
    b1 = jax.random.uniform(k2, (d_model,), jnp.float32, -lim1, lim1)
    w2 = jax.random.uniform(k3, (d_model, d_model), jnp.float32, -lim2, lim2)
    b2 = jax.random.uniform(k4, (d_model,), jnp.float32, -lim2, lim2)
    return w1, b1, w2, b2


if __name__ == "__main__":
    # Small shapes consistent with the module: B=2, T=8, d_input=40, d_model=64.
    B, T, d_input, d_model = 2, 8, 40, 64

    key = jax.random.PRNGKey(0)
    kx, km, kp = jax.random.split(key, 3)

    x = jax.random.normal(kx, (B, T, d_input), jnp.float32)
    m = (jax.random.uniform(km, (B, T, d_input)) > 0.5).astype(jnp.float32)
    # Missing values are zero-filled, as in the module docstring.
    x = x * (1.0 - m)

    w1, b1, w2, b2 = init_params(kp, d_input, d_model)

    fwd = jax.jit(functools.partial(token_encoder_forward))
    out = fwd(x, m, w1, b1, w2, b2)
    jax.block_until_ready(out)

    # Pure-JAX f32 reference (kernel uses bf16 MXU inputs -> loosened tolerance).
    xm_ref = jnp.concatenate([x, m], axis=-1)
    h_ref = jnp.maximum(xm_ref @ w1 + b1, 0.0)
    o_ref = jnp.maximum(h_ref @ w2 + b2, 0.0)

    assert out.shape == (B, T, d_model)
    max_err = float(jnp.max(jnp.abs(out - o_ref)))
    assert jnp.allclose(out, o_ref, atol=3e-2, rtol=3e-2), f"max abs err {max_err}"

    print("KERNEL_OK")
</pallas_src>

<mosaic_0001>
module attributes {stable_mosaic.version = 11 : i64} {
  func.func @token_encoder_kernel(%arg0: i32, %arg1: memref<16x40xf32, #tpu.memory_space<vmem>>, %arg2: memref<16x40xbf16, #tpu.memory_space<vmem>>, %arg3: memref<40x128xbf16, #tpu.memory_space<vmem>>, %arg4: memref<40x128xbf16, #tpu.memory_space<vmem>>, %arg5: memref<1x128xf32, #tpu.memory_space<vmem>>, %arg6: memref<128x128xbf16, #tpu.memory_space<vmem>>, %arg7: memref<1x128xf32, #tpu.memory_space<vmem>>, %arg8: memref<16x128xf32, #tpu.memory_space<vmem>>) attributes {dimension_semantics = [#tpu.dimension_semantics<parallel>], iteration_bounds = array<i64: 1>, scalar_prefetch = 0 : i64, scratch_operands = 0 : i64, tpu.core_type = #tpu.core_type<tc>, window_params = [{transform_indices = @transform_0, window_bounds = array<i64: 16, 40>}, {transform_indices = @transform_1, window_bounds = array<i64: 16, 40>}, {pipeline_mode = #tpu.pipeline_mode<synchronous>, transform_indices = @transform_2, window_bounds = array<i64: 40, 128>}, {pipeline_mode = #tpu.pipeline_mode<synchronous>, transform_indices = @transform_3, window_bounds = array<i64: 40, 128>}, {pipeline_mode = #tpu.pipeline_mode<synchronous>, transform_indices = @transform_4, window_bounds = array<i64: 1, 128>}, {pipeline_mode = #tpu.pipeline_mode<synchronous>, transform_indices = @transform_5, window_bounds = array<i64: 128, 128>}, {pipeline_mode = #tpu.pipeline_mode<synchronous>, transform_indices = @transform_6, window_bounds = array<i64: 1, 128>}, {transform_indices = @transform_7, window_bounds = array<i64: 16, 128>}]} {
    %c0 = arith.constant 0 : index
    %c0_0 = arith.constant 0 : index
    %0 = vector.load %arg1[%c0, %c0_0] : memref<16x40xf32, #tpu.memory_space<vmem>>, vector<16x40xf32>
    %1 = arith.truncf %0 : vector<16x40xf32> to vector<16x40xbf16>
    %c0_1 = arith.constant 0 : index
    %c0_2 = arith.constant 0 : index
    %2 = vector.load %arg2[%c0_1, %c0_2] : memref<16x40xbf16, #tpu.memory_space<vmem>>, vector<16x40xbf16>
    %c0_3 = arith.constant 0 : index
    %c0_4 = arith.constant 0 : index
    %3 = vector.load %arg3[%c0_3, %c0_4] : memref<40x128xbf16, #tpu.memory_space<vmem>>, vector<40x128xbf16>
    %cst = arith.constant dense<0.000000e+00> : vector<16x128xf32>
    %4 = tpu.matmul %1, %3, %cst {dimension_numbers = #tpu.dot_dimension_numbers<[1], [0], [0], [1], [0, 0, 1, 1], [], []>} : vector<16x40xbf16>, vector<40x128xbf16>, vector<16x128xf32> -> vector<16x128xf32>
    %c0_5 = arith.constant 0 : index
    %c0_6 = arith.constant 0 : index
    %5 = vector.load %arg4[%c0_5, %c0_6] : memref<40x128xbf16, #tpu.memory_space<vmem>>, vector<40x128xbf16>
    %cst_7 = arith.constant dense<0.000000e+00> : vector<16x128xf32>
    %6 = tpu.matmul %2, %5, %cst_7 {dimension_numbers = #tpu.dot_dimension_numbers<[1], [0], [0], [1], [0, 0, 1, 1], [], []>} : vector<16x40xbf16>, vector<40x128xbf16>, vector<16x128xf32> -> vector<16x128xf32>
    %7 = arith.addf %4, %6 : vector<16x128xf32>
    %c0_8 = arith.constant 0 : index
    %c0_9 = arith.constant 0 : index
    %8 = vector.load %arg5[%c0_8, %c0_9] : memref<1x128xf32, #tpu.memory_space<vmem>>, vector<1x128xf32>
    %9 = vector.broadcast %8 : vector<1x128xf32> to vector<16x128xf32>
    %10 = arith.addf %7, %9 : vector<16x128xf32>
    %cst_10 = arith.constant 0.000000e+00 : f32
    %11 = vector.broadcast %cst_10 : f32 to vector<16x128xf32>
    %12 = arith.maximumf %10, %11 : vector<16x128xf32>
    %13 = arith.truncf %12 : vector<16x128xf32> to vector<16x128xbf16>
    %c0_11 = arith.constant 0 : index
    %c0_12 = arith.constant 0 : index
    %14 = vector.load %arg6[%c0_11, %c0_12] : memref<128x128xbf16, #tpu.memory_space<vmem>>, vector<128x128xbf16>
    %cst_13 = arith.constant dense<0.000000e+00> : vector<16x128xf32>
    %15 = tpu.matmul %13, %14, %cst_13 {dimension_numbers = #tpu.dot_dimension_numbers<[1], [0], [0], [1], [0, 0, 1, 1], [], []>} : vector<16x128xbf16>, vector<128x128xbf16>, vector<16x128xf32> -> vector<16x128xf32>
    %c0_14 = arith.constant 0 : index
    %c0_15 = arith.constant 0 : index
    %16 = vector.load %arg7[%c0_14, %c0_15] : memref<1x128xf32, #tpu.memory_space<vmem>>, vector<1x128xf32>
    %17 = vector.broadcast %16 : vector<1x128xf32> to vector<16x128xf32>
    %18 = arith.addf %15, %17 : vector<16x128xf32>
    %cst_16 = arith.constant 0.000000e+00 : f32
    %19 = vector.broadcast %cst_16 : f32 to vector<16x128xf32>
    %20 = arith.maximumf %18, %19 : vector<16x128xf32>
    %c0_17 = arith.constant 0 : index
    %c0_18 = arith.constant 0 : index
    %21 = vector.load %arg8[%c0_17, %c0_18] : memref<16x128xf32, #tpu.memory_space<vmem>>, vector<16x128xf32>
    tpu.vector_store %arg8[%c0_17, %c0_18], %20 {strides = array<i32>} : memref<16x128xf32, #tpu.memory_space<vmem>>, vector<16x128xf32>,
    return
  }
  func.func @transform_0(%arg0: i32) -> (i32, i32) {
    %c0_i32 = arith.constant 0 : i32
    %c0_i32_0 = arith.constant 0 : i32
    return %arg0, %c0_i32 : i32, i32
  }
  func.func @transform_1(%arg0: i32) -> (i32, i32) {
    %c0_i32 = arith.constant 0 : i32
    %c0_i32_0 = arith.constant 0 : i32
    return %arg0, %c0_i32 : i32, i32
  }
  func.func @transform_2(%arg0: i32) -> (i32, i32) {
    %c0_i32 = arith.constant 0 : i32
    %c0_i32_0 = arith.constant 0 : i32
    %c0_i32_1 = arith.constant 0 : i32
    return %c0_i32, %c0_i32_0 : i32, i32
  }
  func.func @transform_3(%arg0: i32) -> (i32, i32) {
    %c0_i32 = arith.constant 0 : i32
    %c0_i32_0 = arith.constant 0 : i32
    %c0_i32_1 = arith.constant 0 : i32
    return %c0_i32, %c0_i32_0 : i32, i32
  }
  func.func @transform_4(%arg0: i32) -> (i32, i32) {
    %c0_i32 = arith.constant 0 : i32
    %c0_i32_0 = arith.constant 0 : i32
    %c0_i32_1 = arith.constant 0 : i32
    return %c0_i32, %c0_i32_0 : i32, i32
  }
  func.func @transform_5(%arg0: i32) -> (i32, i32) {
    %c0_i32 = arith.constant 0 : i32
    %c0_i32_0 = arith.constant 0 : i32
    %c0_i32_1 = arith.constant 0 : i32
    return %c0_i32, %c0_i32_0 : i32, i32
  }
  func.func @transform_6(%arg0: i32) -> (i32, i32) {
    %c0_i32 = arith.constant 0 : i32
    %c0_i32_0 = arith.constant 0 : i32
    %c0_i32_1 = arith.constant 0 : i32
    return %c0_i32, %c0_i32_0 : i32, i32
  }
  func.func @transform_7(%arg0: i32) -> (i32, i32) {
    %c0_i32 = arith.constant 0 : i32
    %c0_i32_0 = arith.constant 0 : i32
    return %arg0, %c0_i32 : i32, i32
  }
}

</mosaic_0001>

<llo_original>
// kernel: token_encoder_forward.1
$region0: #{token_encoder_forward.1}
  #allocation0 [shape = 'u32[]', space=smem, size = 0x4, offset = 0x4, fixed_abs, tag = 'smem constant byte address 0x4 - core index']
  #allocation1 [shape = 'u32[144,128]{1,0:T(1,128)}', space=vmem, size = 0x12000, scoped, tag = 'internal scratch']
  %s0 = inlined_call_operand.vmem [shape: f32[16,40], index: 0, kind: input, shape index: {}]
  %s1 = inlined_call_operand.vmem [shape: bf16[16,40], index: 1, kind: input, shape index: {}]
  %s2 = inlined_call_operand.vmem [shape: bf16[40,128], index: 2, kind: input, shape index: {}]
  %s3 = inlined_call_operand.vmem [shape: bf16[40,128], index: 3, kind: input, shape index: {}]
  %s4 = inlined_call_operand.vmem [shape: f32[1,128], index: 4, kind: input, shape index: {}]
  %s5 = inlined_call_operand.vmem [shape: bf16[128,128], index: 5, kind: input, shape index: {}]
  %s6 = inlined_call_operand.vmem [shape: f32[1,128], index: 6, kind: input, shape index: {}]
  %s7 = inlined_call_operand.vmem [shape: f32[16,128], index: 7, kind: output, shape index: {}]
  %s8 = sld [smem:[#allocation0]]
  $region38: #{token_encoder_forward.1} parent=0
    _
  %s10 = ssub.s32 1, %s8
  %s11 = scalar_select 0, %s10, %s8
  // Predicated region
  $region2: #{token_encoder_forward.1} parent=0 // pred_check
    _
  $region3: #{token_encoder_forward.1} parent=0 // pred_check_branch
    %13 = sbr.rel (0) target = $region5
  $region4: #{token_encoder_forward.1} parent=0 // pred_region
    _
  $region5: #{token_encoder_forward.1} parent=0 // pred_fallthru
    _
  // Predicated region
  $region6: #{token_encoder_forward.1} parent=0 // pred_check
    _
  $region7: #{token_encoder_forward.1} parent=0 // pred_check_branch
    %15 = sbr.rel (0) target = $region9
  $region8: #{token_encoder_forward.1} parent=0 // pred_region
    _
  $region9: #{token_encoder_forward.1} parent=0 // pred_fallthru
    _
  // Predicated region
  $region10: #{token_encoder_forward.1} parent=0 // pred_check
    _
  $region11: #{token_encoder_forward.1} parent=0 // pred_check_branch
    %17 = sbr.rel (0) target = $region13
  $region12: #{token_encoder_forward.1} parent=0 // pred_region
    _
  $region13: #{token_encoder_forward.1} parent=0 // pred_fallthru
    _
  // Predicated region
  $region14: #{token_encoder_forward.1} parent=0 // pred_check
    _
  $region15: #{token_encoder_forward.1} parent=0 // pred_check_branch
    %19 = sbr.rel (0) target = $region17
  $region16: #{token_encoder_forward.1} parent=0 // pred_region
    _
  $region17: #{token_encoder_forward.1} parent=0 // pred_fallthru
    _
  // Predicated region
  $region18: #{token_encoder_forward.1} parent=0 // pred_check
    _
  $region19: #{token_encoder_forward.1} parent=0 // pred_check_branch
    %21 = sbr.rel (0) target = $region21
  $region20: #{token_encoder_forward.1} parent=0 // pred_region
    _
  $region21: #{token_encoder_forward.1} parent=0 // pred_fallthru
    _
  // Predicated region
  $region22: #{token_encoder_forward.1} parent=0 // pred_check
    _
  $region23: #{token_encoder_forward.1} parent=0 // pred_check_branch
    %23 = sbr.rel (0) target = $region25
  $region24: #{token_encoder_forward.1} parent=0 // pred_region
    _
  $region25: #{token_encoder_forward.1} parent=0 // pred_fallthru
    _
  // Predicated region
  $region26: #{token_encoder_forward.1} parent=0 // pred_check
    _
  $region27: #{token_encoder_forward.1} parent=0 // pred_check_branch
    %25 = sbr.rel (0) target = $region29
  $region28: #{token_encoder_forward.1} parent=0 // pred_region
    _
  $region29: #{token_encoder_forward.1} parent=0 // pred_fallthru
    _
  %v27 = vld [vmem:[%s0] sm:$0xff]
  %v28 = vld [vmem:[%s0 + $0x8] sm:$0xff]
  %v29 = vpack.c.bf16 %v28, %v27
  %v30 = vld [vmem:[%s1] sm:$0xf]
  %v31 = vld [vmem:[%s1 + $0x4] sm:$0xf]
  %v32 = vld [vmem:[%s2] sm:$0xf]
  %v33 = vld [vmem:[%s2 + $0x4] sm:$0xf]
  %v34 = vld [vmem:[%s2 + $0x8] sm:$0xf]
  %v35 = vld [vmem:[%s2 + $0xc] sm:$0xf]
  %v36 = vld [vmem:[%s2 + $0x10] sm:$0xf]
  %v37 = vld [vmem:[%s3] sm:$0xf]
  %v38 = vld [vmem:[%s3 + $0x4] sm:$0xf]
  %v39 = vld [vmem:[%s3 + $0x8] sm:$0xf]
  %v40 = vld [vmem:[%s3 + $0xc] sm:$0xf]
  %v41 = vld [vmem:[%s3 + $0x10] sm:$0xf]
  %v44 = vunpack.c.l.b16 %v30
  %v45 = vunpack.c.l.b16 %v31
  %v46 = vpack.c.b16 %v45, %v44
  %v52 = vunpack.c.l.b16 %v37
  %v53 = vunpack.c.l.b16 %v38
  %v54 = vunpack.c.l.b16 %v39
  %v55 = vunpack.c.l.b16 %v40
  %v56 = vunpack.c.l.b16 %v41
  %v57 = vpack.c.b16 %v53, %v52
  %v58 = vpack.c.b16 %v55, %v54
  %v59 = vpack.c.b16 %v56, %v56
  %vm62 = vcmask 326656
  %v64 = vsel %vm62, %v46, 0
  %vm66 = vcmask 1043456
  %v68 = vsel %vm66, %v59, 0
  %70 = vmatprep.subr.bf16.mxu0 0
  %71 = vmatpush1.bf16.msra.mxu0 %v57
  %72 = vmatprep.subr.bf16.mxu0 0
  %73 = vmatpush1.bf16.msra.mxu0 %v58
  %74 = vmatprep.subr.bf16.mxu0 0
  %75 = vmatpush1.bf16.msra.mxu0 %v68
  %76 = vmatprep.subr.bf16.mxu0 0
  %77 = vmatpush1.bf16.msra.mxu0 0
  %78 = vmatprep.subr.bf16.mxu0 0
  %79 = vmatpush1.bf16.msra.mxu0 0
  %80 = vmatprep.subr.bf16.mxu0 0
  %81 = vmatpush1.bf16.msra.mxu0 0
  %82 = vmatprep.subr.bf16.mxu0 0
  %83 = vmatpush1.bf16.msra.mxu0 0
  %84 = vmatprep.subr.bf16.mxu0 0
  %85 = vmatpush1.bf16.msra.mxu0 0
  %86 = vmatprep.subr.bf16.mxu0 0
  %87 = vmatpush1.bf16.msra.mxu0 0
  %88 = vmatprep.subr.bf16.mxu0 0
  %89 = vmatpush1.bf16.msra.mxu0 0
  %90 = vmatprep.subr.bf16.mxu0 0
  %91 = vmatpush1.bf16.msra.mxu0 0
  %92 = vmatprep.subr.bf16.mxu0 0
  %93 = vmatpush1.bf16.msra.mxu0 0
  %94 = vmatprep.subr.bf16.mxu0 0
  %95 = vmatpush1.bf16.msra.mxu0 0
  %96 = vmatprep.subr.bf16.mxu0 0
  %97 = vmatpush1.bf16.msra.mxu0 0
  %98 = vmatprep.subr.bf16.mxu0 0
  %99 = vmatpush1.bf16.msra.mxu0 0
  %100 = vmatprep.subr.bf16.mxu0 0
  %101 = vmatpush1.bf16.msra.mxu0 0
  %102 = vmatprep.mubr.bf16.mxu0 0
  %103 = vmatmul.mubr.bf16.gmra.mrb[0].mxu0 %v64
  %v104 = vpop.f32.mrb[0].mxu0
  %v105 = vadd.f32 0.0, %v104
  %v106 = vpop.f32.mrb[0].mxu0
  %v107 = vpop.f32.mrb[0].mxu0
  %v108 = vadd.f32 0.0, %v107
  %v109 = vpop.f32.mrb[0].mxu0
  %110 = vdwg.mxu0
  %v116 = vunpack.c.l.b16 %v32
  %v117 = vunpack.c.l.b16 %v33
  %v118 = vunpack.c.l.b16 %v34
  %v119 = vunpack.c.l.b16 %v35
  %v120 = vunpack.c.l.b16 %v36
  %v121 = vpack.c.b16 %v117, %v116
  %v122 = vpack.c.b16 %v119, %v118
  %v123 = vpack.c.b16 %v120, %v120
  %v127 = vsel %vm62, %v29, 0
  %v130 = vsel %vm66, %v123, 0
  %132 = vmatprep.subr.bf16.mxu0 0
  %133 = vmatpush1.bf16.msra.mxu0 %v121
  %134 = vmatprep.subr.bf16.mxu0 0
  %135 = vmatpush1.bf16.msra.mxu0 %v122
  %136 = vmatprep.subr.bf16.mxu0 0
  %137 = vmatpush1.bf16.msra.mxu0 %v130
  %138 = vmatprep.subr.bf16.mxu0 0
  %139 = vmatpush1.bf16.msra.mxu0 0
  %140 = vmatprep.subr.bf16.mxu0 0
  %141 = vmatpush1.bf16.msra.mxu0 0
  %142 = vmatprep.subr.bf16.mxu0 0
  %143 = vmatpush1.bf16.msra.mxu0 0
  %144 = vmatprep.subr.bf16.mxu0 0
  %145 = vmatpush1.bf16.msra.mxu0 0
  %146 = vmatprep.subr.bf16.mxu0 0
  %147 = vmatpush1.bf16.msra.mxu0 0
  %148 = vmatprep.subr.bf16.mxu0 0
  %149 = vmatpush1.bf16.msra.mxu0 0
  %150 = vmatprep.subr.bf16.mxu0 0
  %151 = vmatpush1.bf16.msra.mxu0 0
  %152 = vmatprep.subr.bf16.mxu0 0
  %153 = vmatpush1.bf16.msra.mxu0 0
  %154 = vmatprep.subr.bf16.mxu0 0
  %155 = vmatpush1.bf16.msra.mxu0 0
  %156 = vmatprep.subr.bf16.mxu0 0
  %157 = vmatpush1.bf16.msra.mxu0 0
  %158 = vmatprep.subr.bf16.mxu0 0
  %159 = vmatpush1.bf16.msra.mxu0 0
  %160 = vmatprep.subr.bf16.mxu0 0
  %161 = vmatpush1.bf16.msra.mxu0 0
  %162 = vmatprep.subr.bf16.mxu0 0
  %163 = vmatpush1.bf16.msra.mxu0 0
  %164 = vmatprep.mubr.bf16.mxu0 0
  %165 = vmatmul.mubr.bf16.gmra.mrb[0].mxu0 %v127
  %v166 = vpop.f32.mrb[0].mxu0
  %v167 = vadd.f32 %v105, %v166
  %v168 = vpop.f32.mrb[0].mxu0
  %v169 = vpop.f32.mrb[0].mxu0
  %v170 = vadd.f32 %v108, %v169
  %v171 = vpop.f32.mrb[0].mxu0
  %172 = vdwg.mxu0
  %v173 = vld [vmem:[%s4] sm:$0x1]
  %v175 = vlaneseq
  %v176 = vshrl.u32 %v175, 7
  %v177 = vsub.s32 0, %v176
  %v178 = vrot.slane %v173, %v177
  %v180 = vadd.f32 %v167, %v178
  %v181 = vadd.f32 %v170, %v178
  %v182 = vmax.f32 %v180, 0.0
  %v183 = vmax.f32 %v181, 0.0
  %v184 = vpack.c.bf16 %v183, %v182
  %v185 = vld [vmem:[%s5] sm:$0xf]
  %v186 = vld [vmem:[%s5 + $0x4] sm:$0xf]
  %v187 = vld [vmem:[%s5 + $0x8] sm:$0xf]
  %v188 = vld [vmem:[%s5 + $0xc] sm:$0xf]
  %v189 = vld [vmem:[%s5 + $0x10] sm:$0xf]
  %v190 = vld [vmem:[%s5 + $0x14] sm:$0xf]
  %v191 = vld [vmem:[%s5 + $0x18] sm:$0xf]
  %v192 = vld [vmem:[%s5 + $0x1c] sm:$0xf]
  %v193 = vld [vmem:[%s5 + $0x20] sm:$0xf]
  %v194 = vld [vmem:[%s5 + $0x24] sm:$0xf]
  %v195 = vld [vmem:[%s5 + $0x28] sm:$0xf]
  %v196 = vld [vmem:[%s5 + $0x2c] sm:$0xf]
  %v197 = vld [vmem:[%s5 + $0x30] sm:$0xf]
  %v198 = vld [vmem:[%s5 + $0x34] sm:$0xf]
  %v199 = vld [vmem:[%s5 + $0x38] sm:$0xf]
  %v200 = vld [vmem:[%s5 + $0x3c] sm:$0xf]
  %v201 = vld [vmem:[%s6] sm:$0x1]
  %v203 = vlaneseq
  %v204 = vshrl.u32 %v203, 7
  %v205 = vsub.s32 0, %v204
  %v206 = vrot.slane %v201, %v205
  %v224 = vunpack.c.l.b16 %v185
  %v225 = vunpack.c.l.b16 %v186
  %v226 = vunpack.c.l.b16 %v187
  %v227 = vunpack.c.l.b16 %v188
  %v228 = vunpack.c.l.b16 %v189
  %v229 = vunpack.c.l.b16 %v190
  %v230 = vunpack.c.l.b16 %v191
  %v231 = vunpack.c.l.b16 %v192
  %v232 = vunpack.c.l.b16 %v193
  %v233 = vunpack.c.l.b16 %v194
  %v234 = vunpack.c.l.b16 %v195
  %v235 = vunpack.c.l.b16 %v196
  %v236 = vunpack.c.l.b16 %v197
  %v237 = vunpack.c.l.b16 %v198
  %v238 = vunpack.c.l.b16 %v199
  %v239 = vunpack.c.l.b16 %v200
  %v240 = vpack.c.b16 %v225, %v224
  %v241 = vpack.c.b16 %v227, %v226
  %v242 = vpack.c.b16 %v229, %v228
  %v243 = vpack.c.b16 %v231, %v230
  %v244 = vpack.c.b16 %v233, %v232
  %v245 = vpack.c.b16 %v235, %v234
  %v246 = vpack.c.b16 %v237, %v236
  %v247 = vpack.c.b16 %v239, %v238
  %256 = vmatprep.subr.bf16.mxu0 0
  %257 = vmatpush1.bf16.msra.mxu0 %v240
  %258 = vmatprep.subr.bf16.mxu0 0
  %259 = vmatpush1.bf16.msra.mxu0 %v241
  %260 = vmatprep.subr.bf16.mxu0 0
  %261 = vmatpush1.bf16.msra.mxu0 %v242
  %262 = vmatprep.subr.bf16.mxu0 0
  %263 = vmatpush1.bf16.msra.mxu0 %v243
  %264 = vmatprep.subr.bf16.mxu0 0
  %265 = vmatpush1.bf16.msra.mxu0 %v244
  %266 = vmatprep.subr.bf16.mxu0 0
  %267 = vmatpush1.bf16.msra.mxu0 %v245
  %268 = vmatprep.subr.bf16.mxu0 0
  %269 = vmatpush1.bf16.msra.mxu0 %v246
  %270 = vmatprep.subr.bf16.mxu0 0
  %271 = vmatpush1.bf16.msra.mxu0 %v247
  %272 = vmatprep.subr.bf16.mxu0 0
  %273 = vmatpush1.bf16.msra.mxu0 0
  %274 = vmatprep.subr.bf16.mxu0 0
  %275 = vmatpush1.bf16.msra.mxu0 0
  %276 = vmatprep.subr.bf16.mxu0 0
  %277 = vmatpush1.bf16.msra.mxu0 0
  %278 = vmatprep.subr.bf16.mxu0 0
  %279 = vmatpush1.bf16.msra.mxu0 0
  %280 = vmatprep.subr.bf16.mxu0 0
  %281 = vmatpush1.bf16.msra.mxu0 0
  %282 = vmatprep.subr.bf16.mxu0 0
  %283 = vmatpush1.bf16.msra.mxu0 0
  %284 = vmatprep.subr.bf16.mxu0 0
  %285 = vmatpush1.bf16.msra.mxu0 0
  %286 = vmatprep.subr.bf16.mxu0 0
  %287 = vmatpush1.bf16.msra.mxu0 0
  %288 = vmatprep.mubr.bf16.mxu0 0
  %289 = vmatmul.mubr.bf16.gmra.mrb[0].mxu0 %v184
  %v290 = vpop.f32.mrb[0].mxu0
  %v291 = vadd.f32 %v206, %v290
  %v292 = vpop.f32.mrb[0].mxu0
  %v293 = vpop.f32.mrb[0].mxu0
  %v294 = vadd.f32 %v206, %v293
  %v295 = vpop.f32.mrb[0].mxu0
  %296 = vdwg.mxu0
  %v297 = vmax.f32 %v291, 0.0
  %v298 = vmax.f32 %v294, 0.0
  %299 = vst [vmem:[%s7] sm:$0xff] %v297
  %300 = vst [vmem:[%s7 + $0x8] sm:$0xff] %v298
  // Predicated region
  $region30: #{token_encoder_forward.1} parent=0 // pred_check
    _
  $region31: #{token_encoder_forward.1} parent=0 // pred_check_branch
    %302 = sbr.rel (0) target = $region33
  $region32: #{token_encoder_forward.1} parent=0 // pred_region
    _
  $region33: #{token_encoder_forward.1} parent=0 // pred_fallthru
    _
  // Predicated region
  $region34: #{token_encoder_forward.1} parent=0 // pred_check
    _
  $region35: #{token_encoder_forward.1} parent=0 // pred_check_branch
    %304 = sbr.rel (0) target = $region37
  $region36: #{token_encoder_forward.1} parent=0 // pred_region
    _
  $region37: #{token_encoder_forward.1} parent=0 // pred_fallthru
    _

</llo_original>
